<compile_context>
chip_gen: v7x
topology: tpu7x:2x2x1
jax: 0.10.0
libtpu: 0.0.40
codegen_flags: <defaults>
</compile_context>

<pallas_src>
import functools

import jax
import jax.numpy as jnp
from jax.experimental import pallas as pl
from jax.experimental.pallas import tpu as pltpu

EPS = 1e-8


def _rmsnorm_kernel(x_ref, scale_ref, o_ref, *, eps):
    # x_ref: (block_rows, D) f32 tile resident in VMEM.
    x = x_ref[...]
    d = x.shape[-1]

    # mean of squares over the feature (lane) dim -> (rows, 1)
    ms = jnp.sum(x * x, axis=-1, keepdims=True) * (1.0 / d)
    rms = jnp.sqrt(ms)

    # PyTorch RMSNorm adds eps OUTSIDE the sqrt: x / (rms + eps).  Keep that exact
    # placement; invert the tiny (rows, 1) column once and broadcast-multiply
    # instead of dividing the full (rows, D) tile.
    inv = pl.reciprocal(rms + eps, approx=False)

    o_ref[...] = (x * inv) * scale_ref[...]


def _round_up(v, m):
    return (v + m - 1) // m * m


def rms_norm(x, scale, *, eps=EPS, block_rows=1024):
    """RMSNorm over the last dim (module defaults: p=-1 full norm, bias=False)."""
    # TODO(synk): partial RMSNorm (0 <= p <= 1) and the optional bias/offset term are
    # not implemented; this covers the module's default configuration.
    orig_dtype = x.dtype
    lead = x.shape[:-1]
    D = x.shape[-1]

    # Fold every leading dim into the row (sublane) dimension: one lane-dense
    # (rows, D) slab per grid step instead of one batch element per step.
    x2 = x.reshape(-1, D).astype(jnp.float32)
    R = x2.shape[0]

    br = min(block_rows, _round_up(R, 8))
    br = max(8, (br // 8) * 8)              # sublane multiple of 8
    Rp = _round_up(R, br)
    if Rp != R:
        # zero rows are harmless: 0 / (0 + eps) == 0, sliced off afterwards
        x2 = jnp.pad(x2, ((0, Rp - R), (0, 0)))

    scale2 = scale.reshape(1, D).astype(jnp.float32)

    out = pl.pallas_call(
        functools.partial(_rmsnorm_kernel, eps=eps),
        out_shape=jax.ShapeDtypeStruct((Rp, D), jnp.float32),
        grid=(Rp // br,),
        in_specs=[
            pl.BlockSpec((br, D), lambda i: (i, 0)),     # x row-tile
            pl.BlockSpec((1, D), lambda i: (0, 0)),      # scale (constant per step)
        ],
        out_specs=pl.BlockSpec((br, D), lambda i: (i, 0)),
        compiler_params=pltpu.CompilerParams(
            dimension_semantics=("parallel",),           # rows are independent
        ),
    )(x2, scale2)

    out = out[:R].reshape(*lead, D)
    return out.astype(orig_dtype)


if __name__ == "__main__":
    # batch=2, seq=8, d_model=128 (multiple of 128 lanes -> lane-dense tiles/stores)
    B, N, D = 2, 8, 128
    key = jax.random.PRNGKey(0)
    kx, ks = jax.random.split(key)

    x = jax.random.normal(kx, (B, N, D), jnp.float32)
    scale = 1.0 + 0.1 * jax.random.normal(ks, (D,), jnp.float32)

    out = rms_norm(x, scale)
    jax.block_until_ready(out)

    # Pure-JAX reference of the PyTorch forward (p=-1, bias=False).
    rms = jnp.sqrt(jnp.mean(x * x, axis=-1, keepdims=True))
    ref = scale * (x / (rms + EPS))

    assert out.shape == x.shape
    assert jnp.allclose(out, ref, atol=1e-5, rtol=1e-5)
    print("KERNEL_OK")
</pallas_src>

<mosaic_0001>
module attributes {stable_mosaic.version = 11 : i64} {
  func.func @_rmsnorm_kernel(%arg0: i32, %arg1: memref<16x128xf32, #tpu.memory_space<vmem>>, %arg2: memref<1x128xf32, #tpu.memory_space<vmem>>, %arg3: memref<16x128xf32, #tpu.memory_space<vmem>>) attributes {dimension_semantics = [#tpu.dimension_semantics<parallel>], iteration_bounds = array<i64: 1>, scalar_prefetch = 0 : i64, scratch_operands = 0 : i64, tpu.core_type = #tpu.core_type<tc>, window_params = [{transform_indices = @transform_0, window_bounds = array<i64: 16, 128>}, {pipeline_mode = #tpu.pipeline_mode<synchronous>, transform_indices = @transform_1, window_bounds = array<i64: 1, 128>}, {transform_indices = @transform_2, window_bounds = array<i64: 16, 128>}]} {
    %c0 = arith.constant 0 : index
    %c0_0 = arith.constant 0 : index
    %0 = vector.load %arg1[%c0, %c0_0] : memref<16x128xf32, #tpu.memory_space<vmem>>, vector<16x128xf32>
    %1 = arith.mulf %0, %0 : vector<16x128xf32>
    %cst = arith.constant dense<0.000000e+00> : vector<16xf32>
    %2 = vector.multi_reduction <add>, %1, %cst [1] : vector<16x128xf32> to vector<16xf32>
    %3 = vector.shape_cast %2 : vector<16xf32> to vector<16x1xf32>
    %cst_1 = arith.constant 7.812500e-03 : f32
    %4 = vector.broadcast %cst_1 : f32 to vector<16x1xf32>
    %5 = arith.mulf %3, %4 : vector<16x1xf32>
    %6 = math.sqrt %5 : vector<16x1xf32>
    %cst_2 = arith.constant 9.99999993E-9 : f32
    %7 = vector.broadcast %cst_2 : f32 to vector<16x1xf32>
    %8 = arith.addf %6, %7 : vector<16x1xf32>
    %9 = tpu.reciprocal %8 : vector<16x1xf32> -> vector<16x1xf32>
    %10 = vector.broadcast %9 : vector<16x1xf32> to vector<16x128xf32>
    %11 = arith.mulf %0, %10 : vector<16x128xf32>
    %c0_3 = arith.constant 0 : index
    %c0_4 = arith.constant 0 : index
    %12 = vector.load %arg2[%c0_3, %c0_4] : memref<1x128xf32, #tpu.memory_space<vmem>>, vector<1x128xf32>
    %13 = vector.broadcast %12 : vector<1x128xf32> to vector<16x128xf32>
    %14 = arith.mulf %11, %13 : vector<16x128xf32>
    %c0_5 = arith.constant 0 : index
    %c0_6 = arith.constant 0 : index
    %15 = vector.load %arg3[%c0_5, %c0_6] : memref<16x128xf32, #tpu.memory_space<vmem>>, vector<16x128xf32>
    tpu.vector_store %arg3[%c0_5, %c0_6], %14 {strides = array<i32>} : memref<16x128xf32, #tpu.memory_space<vmem>>, vector<16x128xf32>,
    return
  }
  func.func @transform_0(%arg0: i32) -> (i32, i32) {
    %c0_i32 = arith.constant 0 : i32
    %c0_i32_0 = arith.constant 0 : i32
    return %arg0, %c0_i32 : i32, i32
  }
  func.func @transform_1(%arg0: i32) -> (i32, i32) {
    %c0_i32 = arith.constant 0 : i32
    %c0_i32_0 = arith.constant 0 : i32
    %c0_i32_1 = arith.constant 0 : i32
    return %c0_i32, %c0_i32_0 : i32, i32
  }
  func.func @transform_2(%arg0: i32) -> (i32, i32) {
    %c0_i32 = arith.constant 0 : i32
    %c0_i32_0 = arith.constant 0 : i32
    return %arg0, %c0_i32 : i32, i32
  }
}

</mosaic_0001>

<llo_original>
// kernel: tpu_custom_call.1
$region0: #{tpu_custom_call.1}
  #allocation0 [shape = 'u32[]', space=smem, size = 0x4, offset = 0x4, fixed_abs, tag = 'smem constant byte address 0x4 - core index']
  #allocation1 [shape = 'u32[144,128]{1,0:T(1,128)}', space=vmem, size = 0x12000, scoped, tag = 'internal scratch']
  %s0 = inlined_call_operand.hbm [shape: f32[16,128], index: 0, kind: input, shape index: {}]
  %s1 = inlined_call_operand.vmem [shape: f32[1,128], index: 1, kind: input, shape index: {}]
  %s2 = inlined_call_operand.hbm [shape: f32[16,128], index: 2, kind: output, shape index: {}]
  %s3 = sld [smem:[#allocation0]]
  $region22: #{tpu_custom_call.1} parent=0
    _
  %s5 = ssub.s32 1, %s3
  %s6 = scalar_select 0, %s5, %s3
  $region1: #{tpu_custom_call.1} parent=0
    #allocation2 [shape = 'u8[8192]{0}', space=vmem, size = 0x2000, scoped, tag = 'input window, operand 0, single buffered']
    #allocation3 [shape = 's32[1]{0}', space=sflag, size = 0x4, scoped, tag = 'scoped memory for tpu_custom_call.1']
    #allocation4 [shape = 's32[1]{0}', space=sflag, size = 0x4, scoped, tag = 'scoped memory for tpu_custom_call.1']
    #allocation5 [shape = 'u8[8192]{0}', space=vmem, size = 0x2000, scoped, tag = 'output window, operand 0, single buffered']
    %7 = vsyncpa [#allocation3], 0
    %8 = vsyncpa [#allocation4], 0
    // Predicated region
    $region2: #{tpu_custom_call.1} parent=1 // pred_check
      _
    $region3: #{tpu_custom_call.1} parent=1 // pred_check_branch
      %10 = sbr.rel (0) target = $region5
    $region4: #{tpu_custom_call.1} parent=1 // pred_region
      %s12 = ssub.s32 256, 256
      %13 = vsyncadd [#allocation3], %s12
      %s14 = sshll.u32 [#allocation2], 4
      %s15 = int_to_ptr.vmem [resolvable:$true] %s14
      %20 = dma.hbm_to_vmem [thread:$0]  %s0, 256, %s15, [#allocation3], 128, 128, 8
    $region5: #{tpu_custom_call.1} parent=1 // pred_fallthru
      _
    // Predicated region
    $region6: #{tpu_custom_call.1} parent=1 // pred_check
      _
    $region7: #{tpu_custom_call.1} parent=1 // pred_check_branch
      %22 = sbr.rel (0) target = $region9
    $region8: #{tpu_custom_call.1} parent=1 // pred_region
      _
    $region9: #{tpu_custom_call.1} parent=1 // pred_fallthru
      _
    // Predicated region
    $region10: #{tpu_custom_call.1} parent=1 // pred_check
      _
    $region11: #{tpu_custom_call.1} parent=1 // pred_check_branch
      %24 = sbr.rel (0) target = $region13
    $region12: #{tpu_custom_call.1} parent=1 // pred_region
      %25 = dma.done [#allocation3], 256
    $region13: #{tpu_custom_call.1} parent=1 // pred_fallthru
      _
    %v26 = vld [vmem:[#allocation2] sm:$0xff]
    %v27 = vld [vmem:[#allocation2 + $0x8] sm:$0xff]
    %v28 = vmul.f32 %v26, %v26
    %v29 = vmul.f32 %v27, %v27
    %30 = vadd.xlane.f32.xlu0 %v28
    %v31 = vpop.xlane.xlu0 %30
    %32 = vadd.xlane.f32.xlu0 %v29
    %v33 = vpop.xlane.xlu0 %32
    %v34 = vmul.f32 %v31, 0.0078125
    %v35 = vmul.f32 %v33, 0.0078125
    %v36 = vrsqrt.pop %v34
    %v37 = vmul.f32 %v34, %v36
    %vm38 = vcmp.eq.f32.partialorder %v34, inf
    %v39 = vsel %vm38, %v34, %v37
    %vm40 = vcmp.eq.f32.partialorder %v34, 0.0
    %v41 = vand.u32 %v34, 2147483648
    %v42 = vsel %vm40, %v41, %v39
    %v43 = vrsqrt.pop %v35
    %v44 = vmul.f32 %v35, %v43
    %vm45 = vcmp.eq.f32.partialorder %v35, inf
    %v46 = vsel %vm45, %v35, %v44
    %vm47 = vcmp.eq.f32.partialorder %v35, 0.0
    %v48 = vand.u32 %v35, 2147483648
    %v49 = vsel %vm47, %v48, %v46
    %v50 = vadd.f32 %v42, 1e-08
    %v51 = vadd.f32 %v49, 1e-08
    %v52 = vrcp.pop %v50
    %v53 = vrcp.pop %v51
    %v54 = vmul.f32 %v26, %v52
    %v55 = vmul.f32 %v27, %v53
    %v56 = vld [vmem:[%s1] sm:$0x1]
    %v58 = vlaneseq
    %v59 = vshrl.u32 %v58, 7
    %v60 = vsub.s32 0, %v59
    %v61 = vrot.slane %v56, %v60
    %v63 = vmul.f32 %v54, %v61
    %v64 = vmul.f32 %v55, %v61
    %65 = vst [vmem:[#allocation5] sm:$0xff] %v63
    %66 = vst [vmem:[#allocation5 + $0x8] sm:$0xff] %v64
    // Predicated region
    $region14: #{tpu_custom_call.1} parent=1 // pred_check
      _
    $region15: #{tpu_custom_call.1} parent=1 // pred_check_branch
      %68 = sbr.rel (0) target = $region17
    $region16: #{tpu_custom_call.1} parent=1 // pred_region
      %s70 = ssub.s32 256, 256
      %71 = vsyncadd [#allocation4], %s70
      %s72 = sshll.u32 [#allocation5], 4
      %s73 = int_to_ptr.vmem [resolvable:$true] %s72
      %78 = dma.vmem_to_hbm [thread:$0]  %s73, 256, %s2, [#allocation4], 128, 128, 8
    $region17: #{tpu_custom_call.1} parent=1 // pred_fallthru
      _
    // Predicated region
    $region18: #{tpu_custom_call.1} parent=1 // pred_check
      _
    $region19: #{tpu_custom_call.1} parent=1 // pred_check_branch
      %80 = sbr.rel (0) target = $region21
    $region20: #{tpu_custom_call.1} parent=1 // pred_region
      %81 = dma.done [#allocation4], 256
    $region21: #{tpu_custom_call.1} parent=1 // pred_fallthru
      _
    %82 = vsyncpa [#allocation3], 1
    %83 = vsyncpa [#allocation4], 1

</llo_original>
